<compile_context>
chip_gen: v5e
topology: v5e:2x2
jax: 0.10.0
libtpu: 0.0.40
codegen_flags: <defaults>
</compile_context>

<pallas_src>
import functools

import jax
import jax.numpy as jnp
from jax.experimental import pallas as pl
from jax.experimental.pallas import tpu as pltpu


def _round_up(n, m):
    return ((n + m - 1) // m) * m


def _apply_act(y, act_name):
    if act_name == "tanh":
        return jnp.tanh(y)
    if act_name == "relu":
        return jnp.maximum(y, 0.0)
    if act_name == "sigmoid":
        return jax.nn.sigmoid(y)
    raise ValueError(f"unsupported activation: {act_name}")


def _mlp_kernel(*refs, n_layers, act_name):
    # refs = (x_ref, w0, b0, w1, b1, ..., w_{n-1}, b_{n-1}, o_ref)
    x_ref = refs[0]
    o_ref = refs[-1]
    wb = refs[1:-1]

    h = x_ref[...].astype(jnp.float32)            # (Din, TB): batch on lanes
    tb = h.shape[-1]

    for i in range(n_layers):
        w = wb[2 * i][...]                        # (dout, din)  PyTorch layout
        b = wb[2 * i + 1][...]                    # (dout, 1)
        dout, din = w.shape
        bias = jnp.broadcast_to(b, (dout, tb))    # lane-broadcast of the bias column
        if din <= 4:
            # Tiny contraction dim: a K<=4 matmul is just a few broadcasted FMAs
            # on the VPU; no point paying MXU push/pop latency.
            y = bias
            for k in range(din):
                y = y + (jnp.broadcast_to(w[:, k:k + 1], (dout, tb)) *
                         jnp.broadcast_to(h[k:k + 1, :], (dout, tb)))
        else:
            y = jnp.dot(w, h, preferred_element_type=jnp.float32) + bias
        if i < n_layers - 1:
            y = _apply_act(y, act_name)           # f32 activation (EUP slot, ~free)
        h = y

    o_ref[...] = h.astype(o_ref.dtype)            # lane-dense store


def feedforward_pallas(x, params, *, activation="tanh", batch_tile=512):
    """Fused MLP forward.

    x:      (B, Din) row-major activations.
    params: list of (W, b) with W shaped (out_features, in_features) (PyTorch layout)
            and b shaped (out_features,).
    """
    B, d_in = x.shape
    d_out = params[-1][0].shape[0]
    n_layers = len(params)
    dtype = x.dtype

    # Put batch on the 128-lane axis: operate on x^T = (features, batch), padded so
    # the batch dimension is a multiple of the (128-aligned) batch tile.
    tb = min(batch_tile, _round_up(B, 128))
    b_pad = _round_up(B, tb)
    x_t = x.T
    if b_pad != B:
        x_t = jnp.pad(x_t, ((0, 0), (0, b_pad - B)))

    in_specs = [pl.BlockSpec((d_in, tb), lambda i: (0, i))]
    args = [x_t]
    for w, b in params:
        dout, din = w.shape
        # Whole-array blocks with a constant index_map: weights/biases stay resident
        # in VMEM across all batch-tile grid steps (no re-DMA per step).
        in_specs.append(pl.BlockSpec((dout, din), lambda i: (0, 0)))
        in_specs.append(pl.BlockSpec((dout, 1), lambda i: (0, 0)))
        args.append(w)
        args.append(b.reshape(dout, 1))

    kernel = functools.partial(_mlp_kernel, n_layers=n_layers, act_name=activation)

    y_t = pl.pallas_call(
        kernel,
        out_shape=jax.ShapeDtypeStruct((d_out, b_pad), dtype),
        grid=(b_pad // tb,),
        in_specs=in_specs,
        out_specs=pl.BlockSpec((d_out, tb), lambda i: (0, i)),
        compiler_params=pltpu.CompilerParams(
            # Independent batch tiles: lets v7x shard grid steps across its 2 TCs.
            dimension_semantics=("parallel",),
        ),
    )(*args)

    return y_t[:, :B].T


class FeedForwardPallas:
    """JAX/Pallas equivalent of tedeous.models.FeedForward.

    net = [Linear(l0,l1), act, Linear(l1,l2), act, ..., Linear(l[-2], l[-1])]
    (activation after every Linear except the last).  Weights are stored in
    PyTorch's (out_features, in_features) layout.
    """

    def __init__(self, layers, activation="tanh", key=jax.random.PRNGKey(0)):
        self.layers = list(layers)
        self.activation = activation
        self.params = []
        for i in range(len(layers) - 1):
            fan_in, fan_out = layers[i], layers[i + 1]
            key, wk, bk = jax.random.split(key, 3)
            # PyTorch nn.Linear default init: U(-1/sqrt(fan_in), 1/sqrt(fan_in))
            bound = 1.0 / float(jnp.sqrt(jnp.float32(fan_in)))
            w = jax.random.uniform(wk, (fan_out, fan_in), jnp.float32, -bound, bound)
            b = jax.random.uniform(bk, (fan_out,), jnp.float32, -bound, bound)
            self.params.append((w, b))
        # TODO(synk): reg_param only registers extra scalar nn.Parameters used for
        # inverse-problem training; it does not affect forward(), so it is omitted.

    def __call__(self, x):
        return feedforward_pallas(x, self.params, activation=self.activation)


if __name__ == "__main__":
    # PINN-style MLP: layers [2, 32, 32, 1].
    layers = [2, 32, 32, 1]
    key = jax.random.PRNGKey(0)
    xkey, x2key, pkey = jax.random.split(key, 3)

    model = FeedForwardPallas(layers, activation="tanh", key=pkey)

    def ref_forward(xin):
        h = xin
        for li, (w, b) in enumerate(model.params):
            h = h @ w.T + b
            if li < len(model.params) - 1:
                h = jnp.tanh(h)
        return h

    # Small batch: single grid step, batch padded to one 128-lane tile.
    x = jax.random.normal(xkey, (8, layers[0]), dtype=jnp.float32)
    out = jax.block_until_ready(model(x))
    assert out.shape == (8, layers[-1]), out.shape
    assert jnp.allclose(out, ref_forward(x), atol=1e-4, rtol=1e-4)

    # Larger batch: exercises the batch-tile grid (>1 step) and the padding path.
    x2 = jax.random.normal(x2key, (700, layers[0]), dtype=jnp.float32)
    out2 = jax.block_until_ready(model(x2))
    assert out2.shape == (700, layers[-1]), out2.shape
    assert jnp.allclose(out2, ref_forward(x2), atol=1e-4, rtol=1e-4)

    print("KERNEL_OK")
</pallas_src>

<mosaic_0001>
module attributes {stable_mosaic.version = 11 : i64} {
  func.func @_mlp_kernel(%arg0: i32, %arg1: memref<2x128xf32, #tpu.memory_space<vmem>>, %arg2: memref<32x2xf32, #tpu.memory_space<vmem>>, %arg3: memref<32x1xf32, #tpu.memory_space<vmem>>, %arg4: memref<32x32xf32, #tpu.memory_space<vmem>>, %arg5: memref<32x1xf32, #tpu.memory_space<vmem>>, %arg6: memref<1x32xf32, #tpu.memory_space<vmem>>, %arg7: memref<1x1xf32, #tpu.memory_space<vmem>>, %arg8: memref<1x128xf32, #tpu.memory_space<vmem>>) attributes {dimension_semantics = [#tpu.dimension_semantics<parallel>], iteration_bounds = array<i64: 1>, scalar_prefetch = 0 : i64, scratch_operands = 0 : i64, tpu.core_type = #tpu.core_type<tc>, window_params = [{transform_indices = @transform_0, window_bounds = array<i64: 2, 128>}, {pipeline_mode = #tpu.pipeline_mode<synchronous>, transform_indices = @transform_1, window_bounds = array<i64: 32, 2>}, {pipeline_mode = #tpu.pipeline_mode<synchronous>, transform_indices = @transform_2, window_bounds = array<i64: 32, 1>}, {pipeline_mode = #tpu.pipeline_mode<synchronous>, transform_indices = @transform_3, window_bounds = array<i64: 32, 32>}, {pipeline_mode = #tpu.pipeline_mode<synchronous>, transform_indices = @transform_4, window_bounds = array<i64: 32, 1>}, {pipeline_mode = #tpu.pipeline_mode<synchronous>, transform_indices = @transform_5, window_bounds = array<i64: 1, 32>}, {pipeline_mode = #tpu.pipeline_mode<synchronous>, transform_indices = @transform_6, window_bounds = array<i64: 1, 1>}, {transform_indices = @transform_7, window_bounds = array<i64: 1, 128>}]} {
    %c0 = arith.constant 0 : index
    %c0_0 = arith.constant 0 : index
    %0 = vector.load %arg1[%c0, %c0_0] : memref<2x128xf32, #tpu.memory_space<vmem>>, vector<2x128xf32>
    %c0_1 = arith.constant 0 : index
    %c0_2 = arith.constant 0 : index
    %1 = vector.load %arg2[%c0_1, %c0_2] : memref<32x2xf32, #tpu.memory_space<vmem>>, vector<32x2xf32>
    %c0_3 = arith.constant 0 : index
    %c0_4 = arith.constant 0 : index
    %2 = vector.load %arg3[%c0_3, %c0_4] : memref<32x1xf32, #tpu.memory_space<vmem>>, vector<32x1xf32>
    %3 = vector.shape_cast %2 : vector<32x1xf32> to vector<32x1xf32>
    %4 = vector.broadcast %3 : vector<32x1xf32> to vector<32x128xf32>
    %5 = vector.extract_strided_slice %1 {offsets = [0, 0], sizes = [32, 1], strides = [1, 1]} : vector<32x2xf32> to vector<32x1xf32>
    %6 = vector.shape_cast %5 : vector<32x1xf32> to vector<32x1xf32>
    %7 = vector.broadcast %6 : vector<32x1xf32> to vector<32x128xf32>
    %8 = vector.extract_strided_slice %0 {offsets = [0, 0], sizes = [1, 128], strides = [1, 1]} : vector<2x128xf32> to vector<1x128xf32>
    %9 = vector.shape_cast %8 : vector<1x128xf32> to vector<1x128xf32>
    %10 = vector.broadcast %9 : vector<1x128xf32> to vector<32x128xf32>
    %11 = arith.mulf %7, %10 : vector<32x128xf32>
    %12 = arith.addf %4, %11 : vector<32x128xf32>
    %13 = vector.extract_strided_slice %1 {offsets = [0, 1], sizes = [32, 1], strides = [1, 1]} : vector<32x2xf32> to vector<32x1xf32>
    %14 = vector.shape_cast %13 : vector<32x1xf32> to vector<32x1xf32>
    %15 = vector.broadcast %14 : vector<32x1xf32> to vector<32x128xf32>
    %16 = vector.extract_strided_slice %0 {offsets = [1, 0], sizes = [1, 128], strides = [1, 1]} : vector<2x128xf32> to vector<1x128xf32>
    %17 = vector.shape_cast %16 : vector<1x128xf32> to vector<1x128xf32>
    %18 = vector.broadcast %17 : vector<1x128xf32> to vector<32x128xf32>
    %19 = arith.mulf %15, %18 : vector<32x128xf32>
    %20 = arith.addf %12, %19 : vector<32x128xf32>
    %21 = math.tanh %20 : vector<32x128xf32>
    %c0_5 = arith.constant 0 : index
    %c0_6 = arith.constant 0 : index
    %22 = vector.load %arg4[%c0_5, %c0_6] : memref<32x32xf32, #tpu.memory_space<vmem>>, vector<32x32xf32>
    %c0_7 = arith.constant 0 : index
    %c0_8 = arith.constant 0 : index
    %23 = vector.load %arg5[%c0_7, %c0_8] : memref<32x1xf32, #tpu.memory_space<vmem>>, vector<32x1xf32>
    %24 = vector.shape_cast %23 : vector<32x1xf32> to vector<32x1xf32>
    %25 = vector.broadcast %24 : vector<32x1xf32> to vector<32x128xf32>
    %cst = arith.constant dense<0.000000e+00> : vector<32x128xf32>
    %26 = tpu.matmul %22, %21, %cst {dimension_numbers = #tpu.dot_dimension_numbers<[1], [0], [0], [1], [0, 0, 1, 1], [], []>} : vector<32x32xf32>, vector<32x128xf32>, vector<32x128xf32> -> vector<32x128xf32>
    %27 = arith.addf %26, %25 : vector<32x128xf32>
    %28 = math.tanh %27 : vector<32x128xf32>
    %c0_9 = arith.constant 0 : index
    %c0_10 = arith.constant 0 : index
    %29 = vector.load %arg6[%c0_9, %c0_10] : memref<1x32xf32, #tpu.memory_space<vmem>>, vector<1x32xf32>
    %c0_11 = arith.constant 0 : index
    %c0_12 = arith.constant 0 : index
    %30 = vector.load %arg7[%c0_11, %c0_12] : memref<1x1xf32, #tpu.memory_space<vmem>>, vector<1x1xf32>
    %31 = vector.shape_cast %30 : vector<1x1xf32> to vector<1x1xf32>
    %32 = vector.broadcast %31 : vector<1x1xf32> to vector<1x128xf32>
    %cst_13 = arith.constant dense<0.000000e+00> : vector<1x128xf32>
    %33 = tpu.matmul %29, %28, %cst_13 {dimension_numbers = #tpu.dot_dimension_numbers<[1], [0], [0], [1], [0, 0, 1, 1], [], []>} : vector<1x32xf32>, vector<32x128xf32>, vector<1x128xf32> -> vector<1x128xf32>
    %34 = arith.addf %33, %32 : vector<1x128xf32>
    %c0_14 = arith.constant 0 : index
    %c0_15 = arith.constant 0 : index
    %35 = vector.load %arg8[%c0_14, %c0_15] : memref<1x128xf32, #tpu.memory_space<vmem>>, vector<1x128xf32>
    tpu.vector_store %arg8[%c0_14, %c0_15], %34 {strides = array<i32>} : memref<1x128xf32, #tpu.memory_space<vmem>>, vector<1x128xf32>,
    return
  }
  func.func @transform_0(%arg0: i32) -> (i32, i32) {
    %c0_i32 = arith.constant 0 : i32
    %c0_i32_0 = arith.constant 0 : i32
    return %c0_i32, %arg0 : i32, i32
  }
  func.func @transform_1(%arg0: i32) -> (i32, i32) {
    %c0_i32 = arith.constant 0 : i32
    %c0_i32_0 = arith.constant 0 : i32
    %c0_i32_1 = arith.constant 0 : i32
    return %c0_i32, %c0_i32_0 : i32, i32
  }
  func.func @transform_2(%arg0: i32) -> (i32, i32) {
    %c0_i32 = arith.constant 0 : i32
    %c0_i32_0 = arith.constant 0 : i32
    %c0_i32_1 = arith.constant 0 : i32
    return %c0_i32, %c0_i32_0 : i32, i32
  }
  func.func @transform_3(%arg0: i32) -> (i32, i32) {
    %c0_i32 = arith.constant 0 : i32
    %c0_i32_0 = arith.constant 0 : i32
    %c0_i32_1 = arith.constant 0 : i32
    return %c0_i32, %c0_i32_0 : i32, i32
  }
  func.func @transform_4(%arg0: i32) -> (i32, i32) {
    %c0_i32 = arith.constant 0 : i32
    %c0_i32_0 = arith.constant 0 : i32
    %c0_i32_1 = arith.constant 0 : i32
    return %c0_i32, %c0_i32_0 : i32, i32
  }
  func.func @transform_5(%arg0: i32) -> (i32, i32) {
    %c0_i32 = arith.constant 0 : i32
    %c0_i32_0 = arith.constant 0 : i32
    %c0_i32_1 = arith.constant 0 : i32
    return %c0_i32, %c0_i32_0 : i32, i32
  }
  func.func @transform_6(%arg0: i32) -> (i32, i32) {
    %c0_i32 = arith.constant 0 : i32
    %c0_i32_0 = arith.constant 0 : i32
    %c0_i32_1 = arith.constant 0 : i32
    return %c0_i32, %c0_i32_0 : i32, i32
  }
  func.func @transform_7(%arg0: i32) -> (i32, i32) {
    %c0_i32 = arith.constant 0 : i32
    %c0_i32_0 = arith.constant 0 : i32
    return %c0_i32, %arg0 : i32, i32
  }
}

</mosaic_0001>

<llo_original>
// kernel: tpu_custom_call.1
$region0: #{tpu_custom_call.1}
  #allocation0 [shape = 'u32[]', space=smem, size = 0x4, offset = 0x4, fixed_abs, tag = 'smem constant byte address 0x4 - core index']
  #allocation1 [shape = 'u32[72,128]{1,0:T(1,128)}', space=vmem, size = 0x9000, scoped, tag = 'internal scratch']
  #allocation2 [shape = 'f32[1,1]{1,0:T(1,128)S(1)}', space=vmem, size = 0x200, scoped, tag = 'scoped memory for tpu_custom_call.1']
  %s0 = inlined_call_operand.vmem [shape: f32[2,128], index: 0, kind: input, shape index: {}]
  %s1 = inlined_call_operand.vmem [shape: f32[32,2], index: 1, kind: input, shape index: {}]
  %s2 = inlined_call_operand.vmem [shape: f32[32,1], index: 2, kind: input, shape index: {}]
  %s3 = inlined_call_operand.vmem [shape: f32[32,32], index: 3, kind: input, shape index: {}]
  %s4 = inlined_call_operand.vmem [shape: f32[32,1], index: 4, kind: input, shape index: {}]
  %s5 = inlined_call_operand.vmem [shape: f32[1,32], index: 5, kind: input, shape index: {}]
  %s6 = inlined_call_operand.<no memory space> [shape: f32[1,1], index: 6, kind: input, shape index: {}]
  %s7 = inlined_call_operand.hbm [shape: f32[1,128], index: 7, kind: output, shape index: {}]
  %s8 = sld [smem:[#allocation0]]
  $region38: #{tpu_custom_call.1} parent=0
    _
  %s10 = ssub.s32 1, %s8
  %s11 = scalar_select 0, %s10, %s8
  %v12 = vstv %s6
  %13 = vst [vmem:[#allocation2] sm:$0x1] %v12
  $region1: #{tpu_custom_call.1} parent=0
    #allocation3 [shape = 'u8[512]{0}', space=vmem, size = 0x400, scoped, tag = 'output window, operand 0, single buffered']
    #allocation4 [shape = 's32[1]{0}', space=sflag, size = 0x4, scoped, tag = 'scoped memory for tpu_custom_call.1']
    %14 = vsyncpa [#allocation4], 0
    // Predicated region
    $region2: #{tpu_custom_call.1} parent=1 // pred_check
      _
    $region3: #{tpu_custom_call.1} parent=1 // pred_check_branch
      %16 = sbr.rel (0) target = $region5
    $region4: #{tpu_custom_call.1} parent=1 // pred_region
      _
    $region5: #{tpu_custom_call.1} parent=1 // pred_fallthru
      _
    // Predicated region
    $region6: #{tpu_custom_call.1} parent=1 // pred_check
      _
    $region7: #{tpu_custom_call.1} parent=1 // pred_check_branch
      %18 = sbr.rel (0) target = $region9
    $region8: #{tpu_custom_call.1} parent=1 // pred_region
      _
    $region9: #{tpu_custom_call.1} parent=1 // pred_fallthru
      _
    // Predicated region
    $region10: #{tpu_custom_call.1} parent=1 // pred_check
      _
    $region11: #{tpu_custom_call.1} parent=1 // pred_check_branch
      %20 = sbr.rel (0) target = $region13
    $region12: #{tpu_custom_call.1} parent=1 // pred_region
      _
    $region13: #{tpu_custom_call.1} parent=1 // pred_fallthru
      _
    // Predicated region
    $region14: #{tpu_custom_call.1} parent=1 // pred_check
      _
    $region15: #{tpu_custom_call.1} parent=1 // pred_check_branch
      %22 = sbr.rel (0) target = $region17
    $region16: #{tpu_custom_call.1} parent=1 // pred_region
      _
    $region17: #{tpu_custom_call.1} parent=1 // pred_fallthru
      _
    // Predicated region
    $region18: #{tpu_custom_call.1} parent=1 // pred_check
      _
    $region19: #{tpu_custom_call.1} parent=1 // pred_check_branch
      %24 = sbr.rel (0) target = $region21
    $region20: #{tpu_custom_call.1} parent=1 // pred_region
      _
    $region21: #{tpu_custom_call.1} parent=1 // pred_fallthru
      _
    // Predicated region
    $region22: #{tpu_custom_call.1} parent=1 // pred_check
      _
    $region23: #{tpu_custom_call.1} parent=1 // pred_check_branch
      %26 = sbr.rel (0) target = $region25
    $region24: #{tpu_custom_call.1} parent=1 // pred_region
      _
    $region25: #{tpu_custom_call.1} parent=1 // pred_fallthru
      _
    // Predicated region
    $region26: #{tpu_custom_call.1} parent=1 // pred_check
      _
    $region27: #{tpu_custom_call.1} parent=1 // pred_check_branch
      %28 = sbr.rel (0) target = $region29
    $region28: #{tpu_custom_call.1} parent=1 // pred_region
      _
    $region29: #{tpu_custom_call.1} parent=1 // pred_fallthru
      _
    %v29 = vld [vmem:[%s0] sm:$0x3]
    %v30 = vld [vmem:[%s1] sm:$0xff]
    %v31 = vld [vmem:[%s1 + $0x8] sm:$0xff]
    %v32 = vld [vmem:[%s1 + $0x10] sm:$0xff]
    %v33 = vld [vmem:[%s1 + $0x18] sm:$0xff]
    %v34 = vld [vmem:[%s2] sm:$0xff]
    %v35 = vld [vmem:[%s2 + $0x8] sm:$0xff]
    %v36 = vld [vmem:[%s2 + $0x10] sm:$0xff]
    %v37 = vld [vmem:[%s2 + $0x18] sm:$0xff]
    %39 = vset.pattern.permute.xlu0 0
    %40 = vperm.xlu0 %39, %v34
    %v41 = vpop.permute.xlu0 %40
    %44 = vset.pattern.permute.xlu0 0
    %45 = vperm.xlu0 %44, %v35
    %v46 = vpop.permute.xlu0 %45
    %49 = vset.pattern.permute.xlu0 0
    %50 = vperm.xlu0 %49, %v36
    %v51 = vpop.permute.xlu0 %50
    %54 = vset.pattern.permute.xlu0 0
    %55 = vperm.xlu0 %54, %v37
    %v56 = vpop.permute.xlu0 %55
    %59 = vset.pattern.permute.xlu0 0
    %60 = vperm.xlu0 %59, %v30
    %v61 = vpop.permute.xlu0 %60
    %64 = vset.pattern.permute.xlu0 0
    %65 = vperm.xlu0 %64, %v31
    %v66 = vpop.permute.xlu0 %65
    %69 = vset.pattern.permute.xlu0 0
    %70 = vperm.xlu0 %69, %v32
    %v71 = vpop.permute.xlu0 %70
    %74 = vset.pattern.permute.xlu0 0
    %75 = vperm.xlu0 %74, %v33
    %v76 = vpop.permute.xlu0 %75
    %v78 = vperm.slane %v29, 0
    %v79 = vmul.f32 %v61, %v78
    %v80 = vmul.f32 %v66, %v78
    %v81 = vmul.f32 %v71, %v78
    %v82 = vmul.f32 %v76, %v78
    %v83 = vadd.f32 %v41, %v79
    %v84 = vadd.f32 %v46, %v80
    %v85 = vadd.f32 %v51, %v81
    %v86 = vadd.f32 %v56, %v82
    %87 = vset.pattern.permute.xlu0 1
    %88 = vperm.xlu0 %87, %v30
    %v89 = vpop.permute.xlu0 %88
    %91 = vset.pattern.permute.xlu0 1
    %92 = vperm.xlu0 %91, %v31
    %v93 = vpop.permute.xlu0 %92
    %95 = vset.pattern.permute.xlu0 1
    %96 = vperm.xlu0 %95, %v32
    %v97 = vpop.permute.xlu0 %96
    %99 = vset.pattern.permute.xlu0 1
    %100 = vperm.xlu0 %99, %v33
    %v101 = vpop.permute.xlu0 %100
    %v103 = vperm.slane %v29, 1
    %v104 = vmul.f32 %v89, %v103
    %v105 = vmul.f32 %v93, %v103
    %v106 = vmul.f32 %v97, %v103
    %v107 = vmul.f32 %v101, %v103
    %v108 = vadd.f32 %v83, %v104
    %v109 = vadd.f32 %v84, %v105
    %v110 = vadd.f32 %v85, %v106
    %v111 = vadd.f32 %v86, %v107
    %v112 = vtanh.pop %v108
    %v113 = vtanh.pop %v109
    %v114 = vtanh.pop %v110
    %v115 = vtanh.pop %v111
    %v116 = vld [vmem:[%s3] sm:$0xff]
    %v117 = vld [vmem:[%s3 + $0x8] sm:$0xff]
    %v118 = vld [vmem:[%s3 + $0x10] sm:$0xff]
    %v119 = vld [vmem:[%s3 + $0x18] sm:$0xff]
    %v120 = vld [vmem:[%s4] sm:$0xff]
    %v121 = vld [vmem:[%s4 + $0x8] sm:$0xff]
    %v122 = vld [vmem:[%s4 + $0x10] sm:$0xff]
    %v123 = vld [vmem:[%s4 + $0x18] sm:$0xff]
    %125 = vset.pattern.permute.xlu0 0
    %126 = vperm.xlu0 %125, %v120
    %v127 = vpop.permute.xlu0 %126
    %130 = vset.pattern.permute.xlu0 0
    %131 = vperm.xlu0 %130, %v121
    %v132 = vpop.permute.xlu0 %131
    %135 = vset.pattern.permute.xlu0 0
    %136 = vperm.xlu0 %135, %v122
    %v137 = vpop.permute.xlu0 %136
    %140 = vset.pattern.permute.xlu0 0
    %141 = vperm.xlu0 %140, %v123
    %v142 = vpop.permute.xlu0 %141
    %vm144 = vcmask 261120
    %v146 = vsel %vm144, %v116, 0
    %v149 = vsel %vm144, %v117, 0
    %v152 = vsel %vm144, %v118, 0
    %v155 = vsel %vm144, %v119, 0
    %157 = vmatpush.msra.mxu0 0.0
    %158 = vmatpush.msra.mxu0 0.0
    %159 = vmatpush.msra.mxu0 0.0
    %160 = vmatpush.msra.mxu0 0.0
    %161 = vmatpush.msra.mxu0 0.0
    %162 = vmatpush.msra.mxu0 0.0
    %163 = vmatpush.msra.mxu0 0.0
    %164 = vmatpush.msra.mxu0 0.0
    %165 = vmatpush.msra.mxu0 0.0
    %166 = vmatpush.msra.mxu0 0.0
    %167 = vmatpush.msra.mxu0 0.0
    %168 = vmatpush.msra.mxu0 0.0
    %169 = vmatpush.msra.mxu0 %v115
    %170 = vmatpush.msra.mxu0 %v114
    %171 = vmatpush.msra.mxu0 %v113
    %172 = vmatpush.msra.mxu0 %v112
    %173 = vmatmul.f32.gmra.mxu0 %v146
    %v174 = vpop.f32.mrf.mxu0
    %v175 = vadd.f32 %v127, %v174
    %176 = vmatmul.f32.gmra.mxu0 %v149
    %v177 = vpop.f32.mrf.mxu0
    %v178 = vadd.f32 %v132, %v177
    %179 = vmatmul.f32.gmra.mxu0 %v152
    %v180 = vpop.f32.mrf.mxu0
    %v181 = vadd.f32 %v137, %v180
    %182 = vmatmul.f32.gmra.mxu0 %v155
    %v183 = vpop.f32.mrf.mxu0
    %v184 = vadd.f32 %v142, %v183
    %185 = vdwg.mxu0
    %v186 = vtanh.pop %v175
    %v187 = vtanh.pop %v178
    %v188 = vtanh.pop %v181
    %v189 = vtanh.pop %v184
    %v190 = vld [vmem:[%s5] sm:$0x1]
    %v191 = vld [vmem:[#allocation2] sm:$0x1]
    %193 = vset.pattern.permute.xlu0 0
    %194 = vperm.xlu0 %193, %v191
    %v195 = vpop.permute.xlu0 %194
    %v197 = vperm.slane %v195, 0
    %v199 = vsel %vm144, %v190, 0
    %201 = vmatpush.msra.mxu0 0.0
    %202 = vmatpush.msra.mxu0 0.0
    %203 = vmatpush.msra.mxu0 0.0
    %204 = vmatpush.msra.mxu0 0.0
    %205 = vmatpush.msra.mxu0 0.0
    %206 = vmatpush.msra.mxu0 0.0
    %207 = vmatpush.msra.mxu0 0.0
    %208 = vmatpush.msra.mxu0 0.0
    %209 = vmatpush.msra.mxu0 0.0
    %210 = vmatpush.msra.mxu0 0.0
    %211 = vmatpush.msra.mxu0 0.0
    %212 = vmatpush.msra.mxu0 0.0
    %213 = vmatpush.msra.mxu0 %v189
    %214 = vmatpush.msra.mxu0 %v188
    %215 = vmatpush.msra.mxu0 %v187
    %216 = vmatpush.msra.mxu0 %v186
    %217 = vmatmul.f32.gmra.mxu0 %v199
    %v218 = vpop.f32.mrf.mxu0
    %v219 = vadd.f32 %v197, %v218
    %220 = vdwg.mxu0
    %221 = vst [vmem:[#allocation3] sm:$0x1] %v219
    // Predicated region
    $region30: #{tpu_custom_call.1} parent=1 // pred_check
      _
    $region31: #{tpu_custom_call.1} parent=1 // pred_check_branch
      %223 = sbr.rel (0) target = $region33
    $region32: #{tpu_custom_call.1} parent=1 // pred_region
      %225 = vsyncadd [#allocation4], 0
      %s227 = sshll.u32 [#allocation3], 4
      %s228 = int_to_ptr.vmem [resolvable:$true] %s227
      %s229 = sshll.u32 %s7, 4
      %s230 = int_to_ptr.hbm [resolvable:$true] %s229
      %232 = dma.vmem_to_hbm [thread:$0]  %s228, 16, %s230, [#allocation4]
    $region33: #{tpu_custom_call.1} parent=1 // pred_fallthru
      _
    // Predicated region
    $region34: #{tpu_custom_call.1} parent=1 // pred_check
      _
    $region35: #{tpu_custom_call.1} parent=1 // pred_check_branch
      %234 = sbr.rel (0) target = $region37
    $region36: #{tpu_custom_call.1} parent=1 // pred_region
      %236 = dma.done [#allocation4], 16
    $region37: #{tpu_custom_call.1} parent=1 // pred_fallthru
      _
    %237 = vsyncpa [#allocation4], 1

</llo_original>
